<compile_context>
chip_gen: v5e
topology: v5e:2x2
jax: 0.10.0
libtpu: 0.0.40
codegen_flags: <defaults>
</compile_context>

<pallas_src>
import math

import jax
import jax.numpy as jnp
from jax import lax
from jax.experimental import pallas as pl
from jax.experimental.pallas import tpu as pltpu

# ---------------- static configuration ----------------
BATCH = 2
SEQ = 8                         # T
DIM = 32                        # E
NUM_HEADS = 4
NUM_QUERY_GROUPS = 2            # GQA: 2 query heads per KV head
HEAD_DIM = DIM // NUM_HEADS     # 8
Q_PER_KV = NUM_HEADS // NUM_QUERY_GROUPS           # 2
TOTAL_QKV = Q_PER_KV + 2                           # 4
GROUP_COLS = TOTAL_QKV * HEAD_DIM                  # 32: original qkv cols per group
K_OFF = Q_PER_KV * HEAD_DIM                        # 16: k offset within a group
V_OFF = (Q_PER_KV + 1) * HEAD_DIM                  # 24: v offset within a group
QKV_OUT = (NUM_HEADS + 2 * NUM_QUERY_GROUPS) * HEAD_DIM   # 64
ROTARY_PCT = 1.0
N_ELEM = int(ROTARY_PCT * HEAD_DIM)                # 8
HALF = N_ELEM // 2                                 # 4
assert N_ELEM == HEAD_DIM

BT = BATCH * SEQ                                   # 16
HT = NUM_HEADS * BATCH * SEQ                       # 64: stacked q rows (h, b, t)
GT = NUM_QUERY_GROUPS * BATCH * SEQ                # 32: stacked k/v rows (g, b, t)
K_BASE = NUM_HEADS * HEAD_DIM                      # 32: k lane offset (permuted W)
V_BASE = K_BASE + NUM_QUERY_GROUPS * HEAD_DIM      # 48: v lane offset (permuted W)

MASK_VALUE = -1e30   # finite large-negative additive mask (exp underflows to 0)

# packed constants slab layout (CONST_ROWS x CONST_COLS, f32)
CONST_ROWS = 72
CONST_COLS = 64
COS_COL = 32          # [:HT, 32:40]  cos, tiled over (h, b); rows :GT reused for k
SIN_COL = 40          # [:HT, 40:48]  sin (plain; rotate-half sign lives in ROT)
ROT_COL = 48          # [:8, 48:56]   signed half-rotation matrix R (8, 8)
B_QKV_ROW = 64        # [64, :64]     permuted + Q-scaled qkv bias
B_OUT_ROW = 65        # [65, :32]     output-projection bias
# mask occupies [:HT, :GT]


# ------------- fused forward kernel (QKV proj + RoPE + attention + out proj) -------------
def _fused_csa_kernel(x_ref, wqkv_ref, wout_ref, c_ref, o_ref):
    x = x_ref[...]                                               # (BT, E)

    # (1) QKV projection: one MXU dot; W columns pre-permuted to
    #     [Q0..Q3 | K0 K1 | V0 V1] and Q columns pre-scaled by 1/sqrt(head_dim).
    qkv = jnp.dot(x, wqkv_ref[...], preferred_element_type=jnp.float32)
    qkv = qkv + c_ref[B_QKV_ROW:B_QKV_ROW + 1, :QKV_OUT]         # (BT, 64)

    # (2) Stack heads/groups onto the sublane axis, (h|g)-major row order.
    #     Each tensor is a single concat of contiguous lane slices.
    q = jnp.concatenate(
        [qkv[:, h * HEAD_DIM:(h + 1) * HEAD_DIM] for h in range(NUM_HEADS)],
        axis=0)                                                  # (HT, D) = (64, 8)
    k = jnp.concatenate(
        [qkv[:, K_BASE + g * HEAD_DIM:K_BASE + (g + 1) * HEAD_DIM]
         for g in range(NUM_QUERY_GROUPS)], axis=0)              # (GT, D) = (32, 8)
    v = jnp.concatenate(
        [qkv[:, V_BASE + g * HEAD_DIM:V_BASE + (g + 1) * HEAD_DIM]
         for g in range(NUM_QUERY_GROUPS)], axis=0)              # (GT, D) = (32, 8)

    # (3) RoPE, applied exactly once per q row and once per k row.  The signed
    #     rotate-half is one tiny MXU dot with the precomputed (8, 8) matrix.
    cos_q = c_ref[:HT, COS_COL:COS_COL + HEAD_DIM]               # (HT, D)
    sin_q = c_ref[:HT, SIN_COL:SIN_COL + HEAD_DIM]
    cos_k = c_ref[:GT, COS_COL:COS_COL + HEAD_DIM]               # (GT, D)
    sin_k = c_ref[:GT, SIN_COL:SIN_COL + HEAD_DIM]
    rot = c_ref[:HEAD_DIM, ROT_COL:ROT_COL + HEAD_DIM]           # (D, D)

    q = q * cos_q + jnp.dot(q, rot, preferred_element_type=jnp.float32) * sin_q
    k = k * cos_k + jnp.dot(k, rot, preferred_element_type=jnp.float32) * sin_k

    # (4) Attention: ONE score dot, ONE softmax, ONE PV dot for all batches,
    #     heads and groups.  The (HT, GT) additive mask encodes causality,
    #     head->group routing, and the batch block-diagonal.
    s = lax.dot_general(q, k, (((1,), (1,)), ((), ())),
                        preferred_element_type=jnp.float32)      # (HT, GT)
    s = s + c_ref[:HT, :GT]
    m = jnp.max(s, axis=-1, keepdims=True)
    p = jnp.exp(s - m)
    l = jnp.sum(p, axis=-1, keepdims=True)
    o = jnp.dot(p, v, preferred_element_type=jnp.float32)
    o = o * pl.reciprocal(l, approx=True)                        # (HT, D)

    # (5) Un-stack heads back onto the lane axis: (BT, H*D) == (BT, E).
    y = jnp.concatenate([o[h * BT:(h + 1) * BT, :] for h in range(NUM_HEADS)],
                        axis=-1)                                 # (BT, E)

    # (6) Output projection.
    out = jnp.dot(y, wout_ref[...], preferred_element_type=jnp.float32)
    out = out + c_ref[B_OUT_ROW:B_OUT_ROW + 1, :DIM]
    o_ref[...] = out.astype(o_ref.dtype)


def causal_self_attention_forward(x, kparams):
    B, T, E = x.shape
    vmem = pl.BlockSpec(memory_space=pltpu.MemorySpace.VMEM)
    out = pl.pallas_call(
        _fused_csa_kernel,
        out_shape=jax.ShapeDtypeStruct((B * T, E), x.dtype),
        in_specs=[vmem] * 4,
        out_specs=vmem,
    )(x.reshape(B * T, E), kparams["w_qkv"], kparams["w_out"], kparams["consts"])
    return out.reshape(B, T, E)


# ---------------- offline parameter / constant packing ----------------
def build_kernel_params(w_qkv, b_qkv, w_out, b_out, cos, sin):
    """Pre-permute W_qkv/b_qkv to [Q heads | K groups | V groups], fold the
    1/sqrt(head_dim) score scale into the Q columns, and pack all small
    constants (mask, cos, sin, rotation matrix, biases) into one slab.
    Depends only on static config + the rope cache: built once per model."""
    # column permutation of the original (g, slot, d) layout
    perm = []
    for h in range(NUM_HEADS):
        g, j = divmod(h, Q_PER_KV)
        perm.extend(range(g * GROUP_COLS + j * HEAD_DIM,
                          g * GROUP_COLS + (j + 1) * HEAD_DIM))
    for g in range(NUM_QUERY_GROUPS):
        perm.extend(range(g * GROUP_COLS + K_OFF, g * GROUP_COLS + K_OFF + HEAD_DIM))
    for g in range(NUM_QUERY_GROUPS):
        perm.extend(range(g * GROUP_COLS + V_OFF, g * GROUP_COLS + V_OFF + HEAD_DIM))
    perm = jnp.array(perm, dtype=jnp.int32)

    scale = 1.0 / math.sqrt(HEAD_DIM)
    col_scale = jnp.concatenate(
        [jnp.full((NUM_HEADS * HEAD_DIM,), scale, jnp.float32),
         jnp.ones((2 * NUM_QUERY_GROUPS * HEAD_DIM,), jnp.float32)])
    w_qkv_k = (w_qkv[:, perm] * col_scale[None, :]).astype(jnp.float32)
    b_qkv_k = (b_qkv[perm] * col_scale).astype(jnp.float32)

    # additive mask: rows (h, b, tq), cols (g, b', tk)
    row = jnp.arange(HT)
    col = jnp.arange(GT)
    r_h, r_b, r_t = row // (BATCH * SEQ), (row // SEQ) % BATCH, row % SEQ
    c_g, c_b, c_t = col // (BATCH * SEQ), (col // SEQ) % BATCH, col % SEQ
    ok = ((r_b[:, None] == c_b[None, :])
          & ((r_h[:, None] // Q_PER_KV) == c_g[None, :])
          & (c_t[None, :] <= r_t[:, None]))
    mask = jnp.where(ok, 0.0, MASK_VALUE).astype(jnp.float32)          # (HT, GT)

    # rope maps tiled over (h, b); rows :GT double as the (g, b) version
    cos_t = jnp.tile(cos, (NUM_HEADS * BATCH, 1)).astype(jnp.float32)  # (HT, D)
    sin_t = jnp.tile(sin, (NUM_HEADS * BATCH, 1)).astype(jnp.float32)

    # signed half-rotation: (x @ R) == [-x2, x1]
    rot = jnp.zeros((HEAD_DIM, HEAD_DIM), jnp.float32)
    rot = rot.at[jnp.arange(HALF) + HALF, jnp.arange(HALF)].set(-1.0)
    rot = rot.at[jnp.arange(HALF), jnp.arange(HALF) + HALF].set(1.0)

    consts = jnp.zeros((CONST_ROWS, CONST_COLS), jnp.float32)
    consts = consts.at[:HT, :GT].set(mask)
    consts = consts.at[:HT, COS_COL:COS_COL + HEAD_DIM].set(cos_t)
    consts = consts.at[:HT, SIN_COL:SIN_COL + HEAD_DIM].set(sin_t)
    consts = consts.at[:HEAD_DIM, ROT_COL:ROT_COL + HEAD_DIM].set(rot)
    consts = consts.at[B_QKV_ROW, :QKV_OUT].set(b_qkv_k)
    consts = consts.at[B_OUT_ROW, :DIM].set(b_out.astype(jnp.float32))

    return {"w_qkv": w_qkv_k, "w_out": w_out.astype(jnp.float32), "consts": consts}


def build_rope_cache(size, dim, base=10000.0):
    theta = 1.0 / (base ** (jnp.arange(0, dim, 2, dtype=jnp.float32) / dim))
    idx_theta = jnp.outer(jnp.arange(size, dtype=jnp.float32), theta)  # (T, dim//2)
    # forward does cos.repeat(1, 2) / sin.repeat(1, 2) -> tile along last dim
    return jnp.tile(jnp.cos(idx_theta), (1, 2)), jnp.tile(jnp.sin(idx_theta), (1, 2))


# ---------------- pure-JAX reference (original, unpermuted weights) ----------------
def reference_forward(x, params):
    B, T, E = x.shape
    qkv = x @ params["w_qkv"] + params["b_qkv"]
    qkv = qkv.reshape(B, T, NUM_QUERY_GROUPS, TOTAL_QKV, HEAD_DIM)
    q = qkv[:, :, :, :Q_PER_KV, :].reshape(B, T, NUM_HEADS, HEAD_DIM)
    k = qkv[:, :, :, Q_PER_KV, :]
    v = qkv[:, :, :, Q_PER_KV + 1, :]
    cos, sin = params["cos"], params["sin"]          # (T, N_ELEM)

    def rope(t):  # t: (B, T, h, D)
        half = N_ELEM // 2
        x1 = t[..., :half]
        x2 = t[..., half:N_ELEM]
        rotated = jnp.concatenate([-x2, x1], axis=-1)
        roped = t[..., :N_ELEM] * cos[None, :, None, :] + rotated * sin[None, :, None, :]
        return jnp.concatenate([roped, t[..., N_ELEM:]], axis=-1)

    q, k = rope(q), rope(k)
    q = q.transpose(0, 2, 1, 3)                      # (B, H, T, D)
    k = jnp.repeat(k.transpose(0, 2, 1, 3), Q_PER_KV, axis=1)
    v = jnp.repeat(v.transpose(0, 2, 1, 3), Q_PER_KV, axis=1)
    s = jnp.einsum("bhqd,bhkd->bhqk", q, k) / math.sqrt(HEAD_DIM)
    causal = jnp.tril(jnp.ones((T, T), dtype=bool))
    s = jnp.where(causal[None, None], s, -jnp.inf)
    p = jax.nn.softmax(s, axis=-1)
    y = jnp.einsum("bhqk,bhkd->bhqd", p, v)
    y = y.transpose(0, 2, 1, 3).reshape(B, T, E)
    return y @ params["w_out"] + params["b_out"]


if __name__ == "__main__":
    key = jax.random.PRNGKey(0)
    k1, k2, k3, k4, k5 = jax.random.split(key, 5)
    bound = 1.0 / math.sqrt(DIM)
    # original-module parameters (stored (in, out) == transpose of torch Linear)
    w_qkv = jax.random.uniform(k1, (DIM, QKV_OUT), jnp.float32, -bound, bound)
    b_qkv = jax.random.uniform(k2, (QKV_OUT,), jnp.float32, -bound, bound)
    w_out = jax.random.uniform(k3, (DIM, DIM), jnp.float32, -bound, bound)
    b_out = jax.random.uniform(k4, (DIM,), jnp.float32, -bound, bound)
    cos, sin = build_rope_cache(SEQ, N_ELEM)

    kparams = build_kernel_params(w_qkv, b_qkv, w_out, b_out, cos, sin)

    x = jax.random.normal(k5, (BATCH, SEQ, DIM), jnp.float32)

    out = causal_self_attention_forward(x, kparams)
    out = jax.block_until_ready(out)

    ref = reference_forward(x, {"w_qkv": w_qkv, "b_qkv": b_qkv, "w_out": w_out,
                                "b_out": b_out, "cos": cos, "sin": sin})
    assert out.shape == (BATCH, SEQ, DIM)
    # Tolerance covers the EUP approximate reciprocal on the softmax denominator.
    assert jnp.allclose(out, ref, atol=2e-3, rtol=2e-3), "mismatch vs reference"
    print("KERNEL_OK")
</pallas_src>

<mosaic_0001>
module attributes {stable_mosaic.version = 11 : i64} {
  func.func @_fused_csa_kernel(%arg0: memref<16x32xf32, #tpu.memory_space<vmem>>, %arg1: memref<32x64xf32, #tpu.memory_space<vmem>>, %arg2: memref<32x32xf32, #tpu.memory_space<vmem>>, %arg3: memref<72x64xf32, #tpu.memory_space<vmem>>, %arg4: memref<16x32xf32, #tpu.memory_space<vmem>>) attributes {dimension_semantics = [], scalar_prefetch = 0 : i64, scratch_operands = 0 : i64, tpu.core_type = #tpu.core_type<tc>} {
    %c0 = arith.constant 0 : index
    %c0_0 = arith.constant 0 : index
    %0 = vector.load %arg0[%c0, %c0_0] : memref<16x32xf32, #tpu.memory_space<vmem>>, vector<16x32xf32>
    %c0_1 = arith.constant 0 : index
    %c0_2 = arith.constant 0 : index
    %1 = vector.load %arg1[%c0_1, %c0_2] : memref<32x64xf32, #tpu.memory_space<vmem>>, vector<32x64xf32>
    %cst = arith.constant dense<0.000000e+00> : vector<16x64xf32>
    %2 = tpu.matmul %0, %1, %cst {dimension_numbers = #tpu.dot_dimension_numbers<[1], [0], [0], [1], [0, 0, 1, 1], [], []>} : vector<16x32xf32>, vector<32x64xf32>, vector<16x64xf32> -> vector<16x64xf32>
    %c64 = arith.constant 64 : index
    %c0_3 = arith.constant 0 : index
    %3 = vector.load %arg3[%c64, %c0_3] : memref<72x64xf32, #tpu.memory_space<vmem>>, vector<1x64xf32>
    %4 = vector.broadcast %3 : vector<1x64xf32> to vector<16x64xf32>
    %5 = arith.addf %2, %4 : vector<16x64xf32>
    %6 = vector.extract_strided_slice %5 {offsets = [0, 0], sizes = [16, 8], strides = [1, 1]} : vector<16x64xf32> to vector<16x8xf32>
    %7 = vector.extract_strided_slice %5 {offsets = [0, 8], sizes = [16, 8], strides = [1, 1]} : vector<16x64xf32> to vector<16x8xf32>
    %8 = vector.extract_strided_slice %5 {offsets = [0, 16], sizes = [16, 8], strides = [1, 1]} : vector<16x64xf32> to vector<16x8xf32>
    %9 = vector.extract_strided_slice %5 {offsets = [0, 24], sizes = [16, 8], strides = [1, 1]} : vector<16x64xf32> to vector<16x8xf32>
    %10 = tpu.concatenate %6, %7, %8, %9 in 0 : vector<16x8xf32>, vector<16x8xf32>, vector<16x8xf32>, vector<16x8xf32> -> vector<64x8xf32>
    %11 = vector.extract_strided_slice %5 {offsets = [0, 32], sizes = [16, 8], strides = [1, 1]} : vector<16x64xf32> to vector<16x8xf32>
    %12 = vector.extract_strided_slice %5 {offsets = [0, 40], sizes = [16, 8], strides = [1, 1]} : vector<16x64xf32> to vector<16x8xf32>
    %13 = tpu.concatenate %11, %12 in 0 : vector<16x8xf32>, vector<16x8xf32> -> vector<32x8xf32>
    %14 = vector.extract_strided_slice %5 {offsets = [0, 48], sizes = [16, 8], strides = [1, 1]} : vector<16x64xf32> to vector<16x8xf32>
    %15 = vector.extract_strided_slice %5 {offsets = [0, 56], sizes = [16, 8], strides = [1, 1]} : vector<16x64xf32> to vector<16x8xf32>
    %16 = tpu.concatenate %14, %15 in 0 : vector<16x8xf32>, vector<16x8xf32> -> vector<32x8xf32>
    %c0_4 = arith.constant 0 : index
    %c32 = arith.constant 32 : index
    %17 = vector.load %arg3[%c0_4, %c32] : memref<72x64xf32, #tpu.memory_space<vmem>>, vector<64x8xf32>
    %c0_5 = arith.constant 0 : index
    %c40 = arith.constant 40 : index
    %18 = vector.load %arg3[%c0_5, %c40] : memref<72x64xf32, #tpu.memory_space<vmem>>, vector<64x8xf32>
    %c0_6 = arith.constant 0 : index
    %c32_7 = arith.constant 32 : index
    %19 = vector.load %arg3[%c0_6, %c32_7] : memref<72x64xf32, #tpu.memory_space<vmem>>, vector<32x8xf32>
    %c0_8 = arith.constant 0 : index
    %c40_9 = arith.constant 40 : index
    %20 = vector.load %arg3[%c0_8, %c40_9] : memref<72x64xf32, #tpu.memory_space<vmem>>, vector<32x8xf32>
    %c0_10 = arith.constant 0 : index
    %c48 = arith.constant 48 : index
    %21 = vector.load %arg3[%c0_10, %c48] : memref<72x64xf32, #tpu.memory_space<vmem>>, vector<8x8xf32>
    %22 = arith.mulf %10, %17 : vector<64x8xf32>
    %cst_11 = arith.constant dense<0.000000e+00> : vector<64x8xf32>
    %23 = tpu.matmul %10, %21, %cst_11 {dimension_numbers = #tpu.dot_dimension_numbers<[1], [0], [0], [1], [0, 0, 1, 1], [], []>} : vector<64x8xf32>, vector<8x8xf32>, vector<64x8xf32> -> vector<64x8xf32>
    %24 = arith.mulf %23, %18 : vector<64x8xf32>
    %25 = arith.addf %22, %24 : vector<64x8xf32>
    %26 = arith.mulf %13, %19 : vector<32x8xf32>
    %cst_12 = arith.constant dense<0.000000e+00> : vector<32x8xf32>
    %27 = tpu.matmul %13, %21, %cst_12 {dimension_numbers = #tpu.dot_dimension_numbers<[1], [0], [0], [1], [0, 0, 1, 1], [], []>} : vector<32x8xf32>, vector<8x8xf32>, vector<32x8xf32> -> vector<32x8xf32>
    %28 = arith.mulf %27, %20 : vector<32x8xf32>
    %29 = arith.addf %26, %28 : vector<32x8xf32>
    %cst_13 = arith.constant dense<0.000000e+00> : vector<64x32xf32>
    %30 = tpu.matmul %25, %29, %cst_13 {dimension_numbers = #tpu.dot_dimension_numbers<[1], [1], [0], [0], [0, 0, 1, 0], [], []>} : vector<64x8xf32>, vector<32x8xf32>, vector<64x32xf32> -> vector<64x32xf32>
    %c0_14 = arith.constant 0 : index
    %c0_15 = arith.constant 0 : index
    %31 = vector.load %arg3[%c0_14, %c0_15] : memref<72x64xf32, #tpu.memory_space<vmem>>, vector<64x32xf32>
    %32 = arith.addf %30, %31 : vector<64x32xf32>
    %cst_16 = arith.constant dense<0xFF800000> : vector<64xf32>
    %33 = vector.multi_reduction <maximumf>, %32, %cst_16 [1] : vector<64x32xf32> to vector<64xf32>
    %34 = vector.shape_cast %33 : vector<64xf32> to vector<64x1xf32>
    %35 = vector.broadcast %34 : vector<64x1xf32> to vector<64x32xf32>
    %36 = arith.subf %32, %35 : vector<64x32xf32>
    %37 = math.exp %36 : vector<64x32xf32>
    %cst_17 = arith.constant dense<0.000000e+00> : vector<64xf32>
    %38 = vector.multi_reduction <add>, %37, %cst_17 [1] : vector<64x32xf32> to vector<64xf32>
    %39 = vector.shape_cast %38 : vector<64xf32> to vector<64x1xf32>
    %cst_18 = arith.constant dense<0.000000e+00> : vector<64x8xf32>
    %40 = tpu.matmul %37, %16, %cst_18 {dimension_numbers = #tpu.dot_dimension_numbers<[1], [0], [0], [1], [0, 0, 1, 1], [], []>} : vector<64x32xf32>, vector<32x8xf32>, vector<64x8xf32> -> vector<64x8xf32>
    %41 = tpu.reciprocal %39 {approx = true} : vector<64x1xf32> -> vector<64x1xf32>
    %42 = vector.broadcast %41 : vector<64x1xf32> to vector<64x8xf32>
    %43 = arith.mulf %40, %42 : vector<64x8xf32>
    %44 = vector.extract_strided_slice %43 {offsets = [0, 0], sizes = [16, 8], strides = [1, 1]} : vector<64x8xf32> to vector<16x8xf32>
    %45 = vector.extract_strided_slice %43 {offsets = [16, 0], sizes = [16, 8], strides = [1, 1]} : vector<64x8xf32> to vector<16x8xf32>
    %46 = vector.extract_strided_slice %43 {offsets = [32, 0], sizes = [16, 8], strides = [1, 1]} : vector<64x8xf32> to vector<16x8xf32>
    %47 = vector.extract_strided_slice %43 {offsets = [48, 0], sizes = [16, 8], strides = [1, 1]} : vector<64x8xf32> to vector<16x8xf32>
    %48 = tpu.concatenate %44, %45, %46, %47 in 1 : vector<16x8xf32>, vector<16x8xf32>, vector<16x8xf32>, vector<16x8xf32> -> vector<16x32xf32>
    %c0_19 = arith.constant 0 : index
    %c0_20 = arith.constant 0 : index
    %49 = vector.load %arg2[%c0_19, %c0_20] : memref<32x32xf32, #tpu.memory_space<vmem>>, vector<32x32xf32>
    %cst_21 = arith.constant dense<0.000000e+00> : vector<16x32xf32>
    %50 = tpu.matmul %48, %49, %cst_21 {dimension_numbers = #tpu.dot_dimension_numbers<[1], [0], [0], [1], [0, 0, 1, 1], [], []>} : vector<16x32xf32>, vector<32x32xf32>, vector<16x32xf32> -> vector<16x32xf32>
    %c65 = arith.constant 65 : index
    %c0_22 = arith.constant 0 : index
    %51 = vector.load %arg3[%c65, %c0_22] : memref<72x64xf32, #tpu.memory_space<vmem>>, vector<1x32xf32>
    %52 = vector.broadcast %51 : vector<1x32xf32> to vector<16x32xf32>
    %53 = arith.addf %50, %52 : vector<16x32xf32>
    %c0_23 = arith.constant 0 : index
    %c0_24 = arith.constant 0 : index
    %54 = vector.load %arg4[%c0_23, %c0_24] : memref<16x32xf32, #tpu.memory_space<vmem>>, vector<16x32xf32>
    tpu.vector_store %arg4[%c0_23, %c0_24], %53 {strides = array<i32>} : memref<16x32xf32, #tpu.memory_space<vmem>>, vector<16x32xf32>,
    return
  }
}

</mosaic_0001>

<llo_original>
// kernel: tpu_custom_call.1
$region0: #{tpu_custom_call.1}
  #allocation0 [shape = 'u32[]', space=smem, size = 0x4, offset = 0x4, fixed_abs, tag = 'smem constant byte address 0x4 - core index']
  #allocation1 [shape = 'u32[72,128]{1,0:T(1,128)}', space=vmem, size = 0x9000, scoped, tag = 'internal scratch']
  %s0 = inlined_call_operand.vmem [shape: f32[16,32], index: 0, kind: input, shape index: {}]
  %s1 = inlined_call_operand.vmem [shape: f32[32,64], index: 1, kind: input, shape index: {}]
  %s2 = inlined_call_operand.vmem [shape: f32[32,32], index: 2, kind: input, shape index: {}]
  %s3 = inlined_call_operand.vmem [shape: f32[72,64], index: 3, kind: input, shape index: {}]
  %s4 = inlined_call_operand.hbm [shape: f32[16,32], index: 4, kind: output, shape index: {}]
  %s5 = sld [smem:[#allocation0]]
  $region26: #{tpu_custom_call.1} parent=0
    _
  %s7 = ssub.s32 1, %s5
  %s8 = scalar_select 0, %s7, %s5
  $region1: #{tpu_custom_call.1} parent=0
    #allocation2 [shape = 'u8[8192]{0}', space=vmem, size = 0x2000, scoped, tag = 'output window, operand 0, single buffered']
    #allocation3 [shape = 's32[1]{0}', space=sflag, size = 0x4, scoped, tag = 'scoped memory for tpu_custom_call.1']
    %9 = vsyncpa [#allocation3], 0
    // Predicated region
    $region2: #{tpu_custom_call.1} parent=1 // pred_check
      _
    $region3: #{tpu_custom_call.1} parent=1 // pred_check_branch
      %11 = sbr.rel (0) target = $region5
    $region4: #{tpu_custom_call.1} parent=1 // pred_region
      _
    $region5: #{tpu_custom_call.1} parent=1 // pred_fallthru
      _
    // Predicated region
    $region6: #{tpu_custom_call.1} parent=1 // pred_check
      _
    $region7: #{tpu_custom_call.1} parent=1 // pred_check_branch
      %13 = sbr.rel (0) target = $region9
    $region8: #{tpu_custom_call.1} parent=1 // pred_region
      _
    $region9: #{tpu_custom_call.1} parent=1 // pred_fallthru
      _
    // Predicated region
    $region10: #{tpu_custom_call.1} parent=1 // pred_check
      _
    $region11: #{tpu_custom_call.1} parent=1 // pred_check_branch
      %15 = sbr.rel (0) target = $region13
    $region12: #{tpu_custom_call.1} parent=1 // pred_region
      _
    $region13: #{tpu_custom_call.1} parent=1 // pred_fallthru
      _
    // Predicated region
    $region14: #{tpu_custom_call.1} parent=1 // pred_check
      _
    $region15: #{tpu_custom_call.1} parent=1 // pred_check_branch
      %17 = sbr.rel (0) target = $region17
    $region16: #{tpu_custom_call.1} parent=1 // pred_region
      _
    $region17: #{tpu_custom_call.1} parent=1 // pred_fallthru
      _
    %v18 = vld [vmem:[%s0] sm:$0xff]
    %v19 = vld [vmem:[%s0 + $0x8] sm:$0xff]
    %v20 = vld [vmem:[%s1] sm:$0xff]
    %v21 = vld [vmem:[%s1 + $0x8] sm:$0xff]
    %v22 = vld [vmem:[%s1 + $0x10] sm:$0xff]
    %v23 = vld [vmem:[%s1 + $0x18] sm:$0xff]
    %v24 = vld [vmem:[%s3 + $0x40] sm:$0x1]
    %v25 = vperm.slane %v24, 0
    %vm26 = vcmask 261120
    %v28 = vsel %vm26, %v18, 0
    %v31 = vsel %vm26, %v19, 0
    %33 = vmatpush.msra.mxu0 0.0
    %34 = vmatpush.msra.mxu0 0.0
    %35 = vmatpush.msra.mxu0 0.0
    %36 = vmatpush.msra.mxu0 0.0
    %37 = vmatpush.msra.mxu0 0.0
    %38 = vmatpush.msra.mxu0 0.0
    %39 = vmatpush.msra.mxu0 0.0
    %40 = vmatpush.msra.mxu0 0.0
    %41 = vmatpush.msra.mxu0 0.0
    %42 = vmatpush.msra.mxu0 0.0
    %43 = vmatpush.msra.mxu0 0.0
    %44 = vmatpush.msra.mxu0 0.0
    %45 = vmatpush.msra.mxu0 %v23
    %46 = vmatpush.msra.mxu0 %v22
    %47 = vmatpush.msra.mxu0 %v21
    %48 = vmatpush.msra.mxu0 %v20
    %49 = vmatmul.f32.gmra.mxu0 %v28
    %v50 = vpop.f32.mrf.mxu0
    %v51 = vadd.f32 %v25, %v50
    %52 = vmatmul.f32.gmra.mxu0 %v31
    %v53 = vpop.f32.mrf.mxu0
    %v54 = vadd.f32 %v25, %v53
    %55 = vdwg.mxu0
    %58 = vrot.lane.b32.xlu0 %v51, 120
    %v59 = vpop.permute.xlu0 %58
    %60 = vrot.lane.b32.xlu0 %v54, 120
    %v61 = vpop.permute.xlu0 %60
    %64 = vrot.lane.b32.xlu0 %v51, 112
    %v65 = vpop.permute.xlu0 %64
    %66 = vrot.lane.b32.xlu0 %v54, 112
    %v67 = vpop.permute.xlu0 %66
    %70 = vrot.lane.b32.xlu0 %v51, 104
    %v71 = vpop.permute.xlu0 %70
    %72 = vrot.lane.b32.xlu0 %v54, 104
    %v73 = vpop.permute.xlu0 %72
    %v76 = vld [vmem:[%s3] sm:$0xff]
    %v77 = vld [vmem:[%s3 + $0x8] sm:$0xff]
    %v78 = vld [vmem:[%s3 + $0x10] sm:$0xff]
    %v79 = vld [vmem:[%s3 + $0x18] sm:$0xff]
    %v80 = vld [vmem:[%s3 + $0x20] sm:$0xff]
    %v81 = vld [vmem:[%s3 + $0x28] sm:$0xff]
    %v82 = vld [vmem:[%s3 + $0x30] sm:$0xff]
    %v83 = vld [vmem:[%s3 + $0x38] sm:$0xff]
    %92 = vrot.lane.b32.xlu0 %v76, 96
    %v93 = vpop.permute.xlu0 %92
    %94 = vrot.lane.b32.xlu0 %v77, 96
    %v95 = vpop.permute.xlu0 %94
    %96 = vrot.lane.b32.xlu0 %v78, 96
    %v97 = vpop.permute.xlu0 %96
    %98 = vrot.lane.b32.xlu0 %v79, 96
    %v99 = vpop.permute.xlu0 %98
    %100 = vrot.lane.b32.xlu0 %v80, 96
    %v101 = vpop.permute.xlu0 %100
    %102 = vrot.lane.b32.xlu0 %v81, 96
    %v103 = vpop.permute.xlu0 %102
    %104 = vrot.lane.b32.xlu0 %v82, 96
    %v105 = vpop.permute.xlu0 %104
    %106 = vrot.lane.b32.xlu0 %v83, 96
    %v107 = vpop.permute.xlu0 %106
    %v116 = vmul.f32 %v51, %v93
    %v117 = vmul.f32 %v54, %v95
    %v118 = vmul.f32 %v59, %v97
    %v119 = vmul.f32 %v61, %v99
    %v120 = vmul.f32 %v65, %v101
    %v121 = vmul.f32 %v67, %v103
    %v122 = vmul.f32 %v71, %v105
    %v123 = vmul.f32 %v73, %v107
    %124 = vrot.lane.b32.xlu0 %v76, 80
    %v125 = vpop.permute.xlu0 %124
    %vm127 = vcmask 64512
    %v128 = vsel %vm127, %v51, 0
    %v130 = vsel %vm127, %v54, 0
    %v132 = vsel %vm127, %v59, 0
    %v134 = vsel %vm127, %v61, 0
    %v136 = vsel %vm127, %v65, 0
    %v138 = vsel %vm127, %v67, 0
    %v140 = vsel %vm127, %v71, 0
    %v142 = vsel %vm127, %v73, 0
    %144 = vmatpush.msra.mxu0 0.0
    %145 = vmatpush.msra.mxu0 0.0
    %146 = vmatpush.msra.mxu0 0.0
    %147 = vmatpush.msra.mxu0 0.0
    %148 = vmatpush.msra.mxu0 0.0
    %149 = vmatpush.msra.mxu0 0.0
    %150 = vmatpush.msra.mxu0 0.0
    %151 = vmatpush.msra.mxu0 0.0
    %152 = vmatpush.msra.mxu0 0.0
    %153 = vmatpush.msra.mxu0 0.0
    %154 = vmatpush.msra.mxu0 0.0
    %155 = vmatpush.msra.mxu0 0.0
    %156 = vmatpush.msra.mxu0 0.0
    %157 = vmatpush.msra.mxu0 0.0
    %158 = vmatpush.msra.mxu0 0.0
    %159 = vmatpush.msra.mxu0 %v125
    %160 = vmatmul.f32.gmra.mxu0 %v128
    %v161 = vpop.f32.mrf.mxu0
    %v162 = vadd.f32 0.0, %v161
    %163 = vmatmul.f32.gmra.mxu0 %v130
    %v164 = vpop.f32.mrf.mxu0
    %v165 = vadd.f32 0.0, %v164
    %166 = vmatmul.f32.gmra.mxu0 %v132
    %v167 = vpop.f32.mrf.mxu0
    %v168 = vadd.f32 0.0, %v167
    %169 = vmatmul.f32.gmra.mxu0 %v134
    %v170 = vpop.f32.mrf.mxu0
    %v171 = vadd.f32 0.0, %v170
    %172 = vmatmul.f32.gmra.mxu0 %v136
    %v173 = vpop.f32.mrf.mxu0
    %v174 = vadd.f32 0.0, %v173
    %175 = vmatmul.f32.gmra.mxu0 %v138
    %v176 = vpop.f32.mrf.mxu0
    %v177 = vadd.f32 0.0, %v176
    %178 = vmatmul.f32.gmra.mxu0 %v140
    %v179 = vpop.f32.mrf.mxu0
    %v180 = vadd.f32 0.0, %v179
    %181 = vmatmul.f32.gmra.mxu0 %v142
    %v182 = vpop.f32.mrf.mxu0
    %v183 = vadd.f32 0.0, %v182
    %184 = vdwg.mxu0
    %185 = vrot.lane.b32.xlu0 %v76, 88
    %v186 = vpop.permute.xlu0 %185
    %187 = vrot.lane.b32.xlu0 %v77, 88
    %v188 = vpop.permute.xlu0 %187
    %189 = vrot.lane.b32.xlu0 %v78, 88
    %v190 = vpop.permute.xlu0 %189
    %191 = vrot.lane.b32.xlu0 %v79, 88
    %v192 = vpop.permute.xlu0 %191
    %193 = vrot.lane.b32.xlu0 %v80, 88
    %v194 = vpop.permute.xlu0 %193
    %195 = vrot.lane.b32.xlu0 %v81, 88
    %v196 = vpop.permute.xlu0 %195
    %197 = vrot.lane.b32.xlu0 %v82, 88
    %v198 = vpop.permute.xlu0 %197
    %199 = vrot.lane.b32.xlu0 %v83, 88
    %v200 = vpop.permute.xlu0 %199
    %v209 = vmul.f32 %v162, %v186
    %v210 = vmul.f32 %v165, %v188
    %v211 = vmul.f32 %v168, %v190
    %v212 = vmul.f32 %v171, %v192
    %v213 = vmul.f32 %v174, %v194
    %v214 = vmul.f32 %v177, %v196
    %v215 = vmul.f32 %v180, %v198
    %v216 = vmul.f32 %v183, %v200
    %v217 = vadd.f32 %v116, %v209
    %v218 = vadd.f32 %v117, %v210
    %v219 = vadd.f32 %v118, %v211
    %v220 = vadd.f32 %v119, %v212
    %v221 = vadd.f32 %v120, %v213
    %v222 = vadd.f32 %v121, %v214
    %v223 = vadd.f32 %v122, %v215
    %v224 = vadd.f32 %v123, %v216
    %v225 = vmul.f32 %v51, %v76
    %v226 = vmul.f32 %v54, %v77
    %v227 = vmul.f32 %v59, %v78
    %v228 = vmul.f32 %v61, %v79
    %229 = vrot.lane.b32.xlu0 %v51, 96
    %v230 = vpop.permute.xlu0 %229
    %231 = vrot.lane.b32.xlu0 %v54, 96
    %v232 = vpop.permute.xlu0 %231
    %233 = vrot.lane.b32.xlu0 %v59, 96
    %v234 = vpop.permute.xlu0 %233
    %235 = vrot.lane.b32.xlu0 %v61, 96
    %v236 = vpop.permute.xlu0 %235
    %v237 = vsel %vm127, %v230, 0
    %v239 = vsel %vm127, %v232, 0
    %v241 = vsel %vm127, %v234, 0
    %v243 = vsel %vm127, %v236, 0
    %245 = vmatpush.msra.mxu0 0.0
    %246 = vmatpush.msra.mxu0 0.0
    %247 = vmatpush.msra.mxu0 0.0
    %248 = vmatpush.msra.mxu0 0.0
    %249 = vmatpush.msra.mxu0 0.0
    %250 = vmatpush.msra.mxu0 0.0
    %251 = vmatpush.msra.mxu0 0.0
    %252 = vmatpush.msra.mxu0 0.0
    %253 = vmatpush.msra.mxu0 0.0
    %254 = vmatpush.msra.mxu0 0.0
    %255 = vmatpush.msra.mxu0 0.0
    %256 = vmatpush.msra.mxu0 0.0
    %257 = vmatpush.msra.mxu0 0.0
    %258 = vmatpush.msra.mxu0 0.0
    %259 = vmatpush.msra.mxu0 0.0
    %260 = vmatpush.msra.mxu0 %v125
    %261 = vmatmul.f32.gmra.mxu0 %v237
    %v262 = vpop.f32.mrf.mxu0
    %v263 = vadd.f32 0.0, %v262
    %264 = vmatmul.f32.gmra.mxu0 %v239
    %v265 = vpop.f32.mrf.mxu0
    %v266 = vadd.f32 0.0, %v265
    %267 = vmatmul.f32.gmra.mxu0 %v241
    %v268 = vpop.f32.mrf.mxu0
    %v269 = vadd.f32 0.0, %v268
    %270 = vmatmul.f32.gmra.mxu0 %v243
    %v271 = vpop.f32.mrf.mxu0
    %v272 = vadd.f32 0.0, %v271
    %273 = vdwg.mxu0
    %v274 = vmul.f32 %v263, %v186
    %v275 = vmul.f32 %v266, %v188
    %v276 = vmul.f32 %v269, %v190
    %v277 = vmul.f32 %v272, %v192
    %282 = vrot.lane.b32.xlu0 %v274, 32
    %v283 = vpop.permute.xlu0 %282
    %284 = vrot.lane.b32.xlu0 %v275, 32
    %v285 = vpop.permute.xlu0 %284
    %286 = vrot.lane.b32.xlu0 %v276, 32
    %v287 = vpop.permute.xlu0 %286
    %288 = vrot.lane.b32.xlu0 %v277, 32
    %v289 = vpop.permute.xlu0 %288
    %v294 = vadd.f32 %v225, %v283
    %v295 = vadd.f32 %v226, %v285
    %v296 = vadd.f32 %v227, %v287
    %v297 = vadd.f32 %v228, %v289
    %302 = vrot.lane.b32.xlu0 %v294, 96
    %v303 = vpop.permute.xlu0 %302
    %304 = vrot.lane.b32.xlu0 %v295, 96
    %v305 = vpop.permute.xlu0 %304
    %306 = vrot.lane.b32.xlu0 %v296, 96
    %v307 = vpop.permute.xlu0 %306
    %308 = vrot.lane.b32.xlu0 %v297, 96
    %v309 = vpop.permute.xlu0 %308
    %v311 = vsel %vm127, %v217, 0
    %v314 = vsel %vm127, %v218, 0
    %v317 = vsel %vm127, %v219, 0
    %v320 = vsel %vm127, %v220, 0
    %v323 = vsel %vm127, %v221, 0
    %v326 = vsel %vm127, %v222, 0
    %v329 = vsel %vm127, %v223, 0
    %v332 = vsel %vm127, %v224, 0
    %v334 = vsel %vm127, %v303, 0
    %v336 = vsel %vm127, %v305, 0
    %v338 = vsel %vm127, %v307, 0
    %v340 = vsel %vm127, %v309, 0
    %342 = vmatpush.xpose.msra.mxu0 0.0
    %343 = vmatpush.xpose.msra.mxu0 0.0
    %344 = vmatpush.xpose.msra.mxu0 0.0
    %345 = vmatpush.xpose.msra.mxu0 0.0
    %346 = vmatpush.xpose.msra.mxu0 0.0
    %347 = vmatpush.xpose.msra.mxu0 0.0
    %348 = vmatpush.xpose.msra.mxu0 0.0
    %349 = vmatpush.xpose.msra.mxu0 0.0
    %350 = vmatpush.xpose.msra.mxu0 0.0
    %351 = vmatpush.xpose.msra.mxu0 0.0
    %352 = vmatpush.xpose.msra.mxu0 0.0
    %353 = vmatpush.xpose.msra.mxu0 0.0
    %354 = vmatpush.xpose.msra.mxu0 %v340
    %355 = vmatpush.xpose.msra.mxu0 %v338
    %356 = vmatpush.xpose.msra.mxu0 %v336
    %357 = vmatpush.xpose.msra.mxu0 %v334
    %358 = vmatmul.f32.gmra.mxu0 %v311
    %v359 = vpop.f32.mrf.mxu0
    %v360 = vadd.f32 %v76, %v359
    %361 = vmatmul.f32.gmra.mxu0 %v314
    %v362 = vpop.f32.mrf.mxu0
    %v363 = vadd.f32 %v77, %v362
    %364 = vmatmul.f32.gmra.mxu0 %v317
    %v365 = vpop.f32.mrf.mxu0
    %v366 = vadd.f32 %v78, %v365
    %367 = vmatmul.f32.gmra.mxu0 %v320
    %v368 = vpop.f32.mrf.mxu0
    %v369 = vadd.f32 %v79, %v368
    %370 = vmatmul.f32.gmra.mxu0 %v323
    %v371 = vpop.f32.mrf.mxu0
    %v372 = vadd.f32 %v80, %v371
    %373 = vmatmul.f32.gmra.mxu0 %v326
    %v374 = vpop.f32.mrf.mxu0
    %v375 = vadd.f32 %v81, %v374
    %376 = vmatmul.f32.gmra.mxu0 %v329
    %v377 = vpop.f32.mrf.mxu0
    %v378 = vadd.f32 %v82, %v377
    %379 = vmatmul.f32.gmra.mxu0 %v332
    %v380 = vpop.f32.mrf.mxu0
    %v381 = vadd.f32 %v83, %v380
    %382 = vdwg.mxu0
    %v383 = vsel %vm26, %v360, -inf
    %384 = vmax.xlane.f32.xlu0 %v383
    %v385 = vpop.xlane.xlu0 %384
    %v386 = vsel %vm26, %v363, -inf
    %387 = vmax.xlane.f32.xlu0 %v386
    %v388 = vpop.xlane.xlu0 %387
    %v389 = vsel %vm26, %v366, -inf
    %390 = vmax.xlane.f32.xlu0 %v389
    %v391 = vpop.xlane.xlu0 %390
    %v392 = vsel %vm26, %v369, -inf
    %393 = vmax.xlane.f32.xlu0 %v392
    %v394 = vpop.xlane.xlu0 %393
    %v395 = vsel %vm26, %v372, -inf
    %396 = vmax.xlane.f32.xlu0 %v395
    %v397 = vpop.xlane.xlu0 %396
    %v398 = vsel %vm26, %v375, -inf
    %399 = vmax.xlane.f32.xlu0 %v398
    %v400 = vpop.xlane.xlu0 %399
    %v401 = vsel %vm26, %v378, -inf
    %402 = vmax.xlane.f32.xlu0 %v401
    %v403 = vpop.xlane.xlu0 %402
    %v404 = vsel %vm26, %v381, -inf
    %405 = vmax.xlane.f32.xlu0 %v404
    %v406 = vpop.xlane.xlu0 %405
    %v407 = vsub.f32 %v360, %v385
    %v408 = vsub.f32 %v363, %v388
    %v409 = vsub.f32 %v366, %v391
    %v410 = vsub.f32 %v369, %v394
    %v411 = vsub.f32 %v372, %v397
    %v412 = vsub.f32 %v375, %v400
    %v413 = vsub.f32 %v378, %v403
    %v414 = vsub.f32 %v381, %v406
    %v415 = vmul.f32 %v407, 1.442695
    %v416 = vpow.pop %v415
    %v417 = vmul.f32 %v408, 1.442695
    %v418 = vpow.pop %v417
    %v419 = vmul.f32 %v409, 1.442695
    %v420 = vpow.pop %v419
    %v421 = vmul.f32 %v410, 1.442695
    %v422 = vpow.pop %v421
    %v423 = vmul.f32 %v411, 1.442695
    %v424 = vpow.pop %v423
    %v425 = vmul.f32 %v412, 1.442695
    %v426 = vpow.pop %v425
    %v427 = vmul.f32 %v413, 1.442695
    %v428 = vpow.pop %v427
    %v429 = vmul.f32 %v414, 1.442695
    %v430 = vpow.pop %v429
    %v431 = vsel %vm26, %v416, 0.0
    %432 = vadd.xlane.f32.xlu0 %v431
    %v433 = vpop.xlane.xlu0 %432
    %v434 = vsel %vm26, %v418, 0.0
    %435 = vadd.xlane.f32.xlu0 %v434
    %v436 = vpop.xlane.xlu0 %435
    %v437 = vsel %vm26, %v420, 0.0
    %438 = vadd.xlane.f32.xlu0 %v437
    %v439 = vpop.xlane.xlu0 %438
    %v440 = vsel %vm26, %v422, 0.0
    %441 = vadd.xlane.f32.xlu0 %v440
    %v442 = vpop.xlane.xlu0 %441
    %v443 = vsel %vm26, %v424, 0.0
    %444 = vadd.xlane.f32.xlu0 %v443
    %v445 = vpop.xlane.xlu0 %444
    %v446 = vsel %vm26, %v426, 0.0
    %447 = vadd.xlane.f32.xlu0 %v446
    %v448 = vpop.xlane.xlu0 %447
    %v449 = vsel %vm26, %v428, 0.0
    %450 = vadd.xlane.f32.xlu0 %v449
    %v451 = vpop.xlane.xlu0 %450
    %v452 = vsel %vm26, %v430, 0.0
    %453 = vadd.xlane.f32.xlu0 %v452
    %v454 = vpop.xlane.xlu0 %453
    %455 = vrot.lane.b32.xlu0 %v51, 80
    %v456 = vpop.permute.xlu0 %455
    %457 = vrot.lane.b32.xlu0 %v54, 80
    %v458 = vpop.permute.xlu0 %457
    %459 = vrot.lane.b32.xlu0 %v59, 80
    %v460 = vpop.permute.xlu0 %459
    %461 = vrot.lane.b32.xlu0 %v61, 80
    %v462 = vpop.permute.xlu0 %461
    %v468 = vsel %vm26, %v416, 0
    %v471 = vsel %vm26, %v418, 0
    %v474 = vsel %vm26, %v420, 0
    %v477 = vsel %vm26, %v422, 0
    %v480 = vsel %vm26, %v424, 0
    %v483 = vsel %vm26, %v426, 0
    %v486 = vsel %vm26, %v428, 0
    %v489 = vsel %vm26, %v430, 0
    %491 = vmatpush.msra.mxu0 0.0
    %492 = vmatpush.msra.mxu0 0.0
    %493 = vmatpush.msra.mxu0 0.0
    %494 = vmatpush.msra.mxu0 0.0
    %495 = vmatpush.msra.mxu0 0.0
    %496 = vmatpush.msra.mxu0 0.0
    %497 = vmatpush.msra.mxu0 0.0
    %498 = vmatpush.msra.mxu0 0.0
    %499 = vmatpush.msra.mxu0 0.0
    %500 = vmatpush.msra.mxu0 0.0
    %501 = vmatpush.msra.mxu0 0.0
    %502 = vmatpush.msra.mxu0 0.0
    %503 = vmatpush.msra.mxu0 %v462
    %504 = vmatpush.msra.mxu0 %v460
    %505 = vmatpush.msra.mxu0 %v458
    %506 = vmatpush.msra.mxu0 %v456
    %507 = vmatmul.f32.gmra.mxu0 %v468
    %v508 = vpop.f32.mrf.mxu0
    %v509 = vadd.f32 0.0, %v508
    %510 = vmatmul.f32.gmra.mxu0 %v471
    %v511 = vpop.f32.mrf.mxu0
    %v512 = vadd.f32 0.0, %v511
    %513 = vmatmul.f32.gmra.mxu0 %v474
    %v514 = vpop.f32.mrf.mxu0
    %v515 = vadd.f32 0.0, %v514
    %516 = vmatmul.f32.gmra.mxu0 %v477
    %v517 = vpop.f32.mrf.mxu0
    %v518 = vadd.f32 0.0, %v517
    %519 = vmatmul.f32.gmra.mxu0 %v480
    %v520 = vpop.f32.mrf.mxu0
    %v521 = vadd.f32 0.0, %v520
    %522 = vmatmul.f32.gmra.mxu0 %v483
    %v523 = vpop.f32.mrf.mxu0
    %v524 = vadd.f32 0.0, %v523
    %525 = vmatmul.f32.gmra.mxu0 %v486
    %v526 = vpop.f32.mrf.mxu0
    %v527 = vadd.f32 0.0, %v526
    %528 = vmatmul.f32.gmra.mxu0 %v489
    %v529 = vpop.f32.mrf.mxu0
    %v530 = vadd.f32 0.0, %v529
    %531 = vdwg.mxu0
    %v532 = vrcp.pop %v433
    %v533 = vrcp.pop %v436
    %v534 = vrcp.pop %v439
    %v535 = vrcp.pop %v442
    %v536 = vrcp.pop %v445
    %v537 = vrcp.pop %v448
    %v538 = vrcp.pop %v451
    %v539 = vrcp.pop %v454
    %v540 = vmul.f32 %v509, %v532
    %v541 = vmul.f32 %v512, %v533
    %v542 = vmul.f32 %v515, %v534
    %v543 = vmul.f32 %v518, %v535
    %v544 = vmul.f32 %v521, %v536
    %v545 = vmul.f32 %v524, %v537
    %v546 = vmul.f32 %v527, %v538
    %v547 = vmul.f32 %v530, %v539
    %550 = vrot.lane.b32.xlu0 %v542, 8
    %v551 = vpop.permute.xlu0 %550
    %552 = vrot.lane.b32.xlu0 %v543, 8
    %v553 = vpop.permute.xlu0 %552
    %558 = vrot.lane.b32.xlu0 %v544, 16
    %v559 = vpop.permute.xlu0 %558
    %560 = vrot.lane.b32.xlu0 %v545, 16
    %v561 = vpop.permute.xlu0 %560
    %566 = vrot.lane.b32.xlu0 %v546, 24
    %v567 = vpop.permute.xlu0 %566
    %568 = vrot.lane.b32.xlu0 %v547, 24
    %v569 = vpop.permute.xlu0 %568
    %v572 = vsel %vm127, %v540, %v551
    %v573 = vsel %vm127, %v541, %v553
    %vm574 = vcmask 130048
    %v575 = vsel %vm574, %v572, %v559
    %v576 = vsel %vm574, %v573, %v561
    %vm577 = vcmask 195584
    %v578 = vsel %vm577, %v575, %v567
    %v579 = vsel %vm577, %v576, %v569
    %v580 = vld [vmem:[%s2] sm:$0xff]
    %v581 = vld [vmem:[%s2 + $0x8] sm:$0xff]
    %v582 = vld [vmem:[%s2 + $0x10] sm:$0xff]
    %v583 = vld [vmem:[%s2 + $0x18] sm:$0xff]
    %v584 = vld [vmem:[%s3 + $0x41] sm:$0x1]
    %v585 = vperm.slane %v584, 0
    %v587 = vsel %vm26, %v578, 0
    %v590 = vsel %vm26, %v579, 0
    %592 = vmatpush.msra.mxu0 0.0
    %593 = vmatpush.msra.mxu0 0.0
    %594 = vmatpush.msra.mxu0 0.0
    %595 = vmatpush.msra.mxu0 0.0
    %596 = vmatpush.msra.mxu0 0.0
    %597 = vmatpush.msra.mxu0 0.0
    %598 = vmatpush.msra.mxu0 0.0
    %599 = vmatpush.msra.mxu0 0.0
    %600 = vmatpush.msra.mxu0 0.0
    %601 = vmatpush.msra.mxu0 0.0
    %602 = vmatpush.msra.mxu0 0.0
    %603 = vmatpush.msra.mxu0 0.0
    %604 = vmatpush.msra.mxu0 %v583
    %605 = vmatpush.msra.mxu0 %v582
    %606 = vmatpush.msra.mxu0 %v581
    %607 = vmatpush.msra.mxu0 %v580
    %608 = vmatmul.f32.gmra.mxu0 %v587
    %v609 = vpop.f32.mrf.mxu0
    %v610 = vadd.f32 %v585, %v609
    %611 = vmatmul.f32.gmra.mxu0 %v590
    %v612 = vpop.f32.mrf.mxu0
    %v613 = vadd.f32 %v585, %v612
    %614 = vdwg.mxu0
    %615 = vst.msk [vmem:[#allocation2] sm:$0xff] %vm26, %v610
    %616 = vst.msk [vmem:[#allocation2 + $0x8] sm:$0xff] %vm26, %v613
    // Predicated region
    $region18: #{tpu_custom_call.1} parent=1 // pred_check
      _
    $region19: #{tpu_custom_call.1} parent=1 // pred_check_branch
      %618 = sbr.rel (0) target = $region21
    $region20: #{tpu_custom_call.1} parent=1 // pred_region
      %620 = vsyncadd [#allocation3], 0
      %s621 = sshll.u32 [#allocation2], 4
      %s622 = int_to_ptr.vmem [resolvable:$true] %s621
      %s623 = sshll.u32 %s4, 4
      %s624 = int_to_ptr.hbm [resolvable:$true] %s623
      %629 = dma.vmem_to_hbm [thread:$0]  %s622, 256, %s624, [#allocation3], 128, 128, 8
    $region21: #{tpu_custom_call.1} parent=1 // pred_fallthru
      _
    // Predicated region
    $region22: #{tpu_custom_call.1} parent=1 // pred_check
      _
    $region23: #{tpu_custom_call.1} parent=1 // pred_check_branch
      %631 = sbr.rel (0) target = $region25
    $region24: #{tpu_custom_call.1} parent=1 // pred_region
      %633 = dma.done [#allocation3], 256
    $region25: #{tpu_custom_call.1} parent=1 // pred_fallthru
      _
    %634 = vsyncpa [#allocation3], 1

</llo_original>
